<compile_context>
chip_gen: v5e
topology: v5e:2x2
jax: 0.10.0
libtpu: 0.0.40
codegen_flags: <defaults>
</compile_context>

<pallas_src>
import jax
import jax.numpy as jnp
from jax.experimental import pallas as pl
from jax.experimental.pallas import tpu as pltpu

EPS = 1e-5
LANES = 128
M_PAD = 512                      # common M padding unit (LCM of 256 / 512 tiles)
VMEM_LIMIT = 32 * 1024 * 1024    # explicit; within scoped budget on v5e/v6e/v7x


def _round_up(x, m):
    return (x + m - 1) // m * m


# ----------------------------------------------------------------------------
# Kernel 1: tiled GEMM (conv via im2col) + per-tile BatchNorm partial stats.
#   grid = (M_tiles, K_tiles); K innermost (reduction).
#   f32 accumulation in a VMEM scratch; bf16 y written on the last K step;
#   per-channel sum / sum-of-squares emitted as one unmasked (8, cp) store.
# ----------------------------------------------------------------------------
def _mm_stats_kernel(p_ref, w_ref, y_ref, st_ref, acc_ref):
    k = pl.program_id(1)

    @pl.when(k == 0)
    def _init():
        acc_ref[...] = jnp.zeros_like(acc_ref)

    acc_ref[...] += jnp.dot(p_ref[...], w_ref[...],
                            preferred_element_type=jnp.float32)

    @pl.when(k == pl.num_programs(1) - 1)
    def _finalize():
        acc = acc_ref[...]
        y_ref[...] = acc.astype(y_ref.dtype)
        s0 = jnp.sum(acc, axis=0, keepdims=True)          # (1, cp) channel sum
        s1 = jnp.sum(acc * acc, axis=0, keepdims=True)    # (1, cp) channel sumsq
        row = jax.lax.broadcasted_iota(jnp.int32, st_ref.shape, 0)
        st_ref[...] = jnp.where(row == 0, s0, jnp.where(row == 1, s1, 0.0))


def _matmul_stats(p_bf16, w, *, tm=256, tk=256):
    """p_bf16: (M, K) bf16 patches, w: (K, C) f32 weights.

    Returns (y_padded (Mp, Cp) bf16, ch_sum (C,) f32, ch_sumsq (C,) f32).
    Zero padding (rows / K / channels) contributes nothing to the GEMM or the
    statistics, so padding is transparent.
    """
    m, kdim = p_bf16.shape
    c = w.shape[1]
    tk = min(tk, _round_up(kdim, LANES))   # don't over-pad tiny contractions
    mp = _round_up(m, M_PAD)
    kp = _round_up(kdim, tk)
    cp = _round_up(c, LANES)

    pb = p_bf16
    if (mp, kp) != (m, kdim):
        pb = jnp.pad(pb, ((0, mp - m), (0, kp - kdim)))
    wb = jnp.pad(w.astype(jnp.bfloat16), ((0, kp - kdim), (0, cp - c)))
    mt, kt = mp // tm, kp // tk

    y, st = pl.pallas_call(
        _mm_stats_kernel,
        out_shape=(jax.ShapeDtypeStruct((mp, cp), jnp.bfloat16),
                   jax.ShapeDtypeStruct((mt * 8, cp), jnp.float32)),
        grid_spec=pltpu.PrefetchScalarGridSpec(
            num_scalar_prefetch=0,
            grid=(mt, kt),
            in_specs=[pl.BlockSpec((tm, tk), lambda i, k: (i, k)),
                      pl.BlockSpec((tk, cp), lambda i, k: (k, 0))],
            out_specs=[pl.BlockSpec((tm, cp), lambda i, k: (i, 0)),
                       pl.BlockSpec((8, cp), lambda i, k: (i, 0))],
            scratch_shapes=[pltpu.VMEM((tm, cp), jnp.float32)]),
        compiler_params=pltpu.CompilerParams(
            dimension_semantics=("parallel", "arbitrary"),
            vmem_limit_bytes=VMEM_LIMIT),
    )(pb, wb)

    st = st.reshape(mt, 8, cp)
    ch_sum = jnp.sum(st[:, 0, :c], axis=0)
    ch_sumsq = jnp.sum(st[:, 1, :c], axis=0)
    return y, ch_sum, ch_sumsq


# ----------------------------------------------------------------------------
# Tiny per-channel combine (glue; O(C) work): batch mean / biased variance ->
# fused scale s = g * rsqrt(var + eps) and shift t = b - mean * s, padded to Cp.
# ----------------------------------------------------------------------------
def _bn_scale_shift(ch_sum, ch_sumsq, count, gamma, beta, cp):
    count = jnp.float32(count)
    mean = ch_sum / count
    var = jnp.maximum(ch_sumsq / count - mean * mean, 0.0)
    s = gamma.reshape(-1).astype(jnp.float32) * jax.lax.rsqrt(var + EPS)
    t = beta.reshape(-1).astype(jnp.float32) - mean * s
    c = s.shape[0]
    s = jnp.pad(s, (0, cp - c), constant_values=1.0).reshape(1, cp)
    t = jnp.pad(t, (0, cp - c)).reshape(1, cp)
    return s, t


# ----------------------------------------------------------------------------
# Kernel 2: BN apply + ReLU (conv1 epilogue). bf16 in / bf16 out (it is the
# matmul operand for conv2).  f32 math in-kernel.
# ----------------------------------------------------------------------------
def _bn_relu_kernel(y_ref, s_ref, t_ref, o_ref):
    y = y_ref[...].astype(jnp.float32)
    o_ref[...] = jnp.maximum(y * s_ref[...] + t_ref[...], 0.0).astype(o_ref.dtype)


def _bn_relu(y_pad, s, t, *, tm=512):
    mp, cp = y_pad.shape
    mt = mp // tm
    return pl.pallas_call(
        _bn_relu_kernel,
        out_shape=jax.ShapeDtypeStruct((mp, cp), jnp.bfloat16),
        grid_spec=pltpu.PrefetchScalarGridSpec(
            num_scalar_prefetch=0,
            grid=(mt,),
            in_specs=[pl.BlockSpec((tm, cp), lambda i: (i, 0)),
                      pl.BlockSpec((1, cp), lambda i: (0, 0)),
                      pl.BlockSpec((1, cp), lambda i: (0, 0))],
            out_specs=pl.BlockSpec((tm, cp), lambda i: (i, 0))),
        compiler_params=pltpu.CompilerParams(
            dimension_semantics=("parallel",),
            vmem_limit_bytes=VMEM_LIMIT),
    )(y_pad, s, t)


# ----------------------------------------------------------------------------
# Kernel 3: fused residual epilogue:
#   out = relu( y2*s2 + t2  +  sc*ssc + tsc )
# i.e. bn2-apply + shortcut-bn-apply + residual add + final ReLU in one pass.
# Identity shortcut: sc = x (bf16, no copy), ssc = 1, tsc = 0.
# ----------------------------------------------------------------------------
def _bn2_add_relu_kernel(y_ref, s2_ref, t2_ref, sc_ref, ssc_ref, tsc_ref, o_ref):
    y = y_ref[...].astype(jnp.float32) * s2_ref[...] + t2_ref[...]
    sc = sc_ref[...].astype(jnp.float32) * ssc_ref[...] + tsc_ref[...]
    o_ref[...] = jnp.maximum(y + sc, 0.0)


def _bn2_add_relu(y2, s2, t2, sc, ssc, tsc, *, tm=512):
    mp, cp = y2.shape
    mt = mp // tm
    return pl.pallas_call(
        _bn2_add_relu_kernel,
        out_shape=jax.ShapeDtypeStruct((mp, cp), jnp.float32),
        grid_spec=pltpu.PrefetchScalarGridSpec(
            num_scalar_prefetch=0,
            grid=(mt,),
            in_specs=[pl.BlockSpec((tm, cp), lambda i: (i, 0)),
                      pl.BlockSpec((1, cp), lambda i: (0, 0)),
                      pl.BlockSpec((1, cp), lambda i: (0, 0)),
                      pl.BlockSpec((tm, cp), lambda i: (i, 0)),
                      pl.BlockSpec((1, cp), lambda i: (0, 0)),
                      pl.BlockSpec((1, cp), lambda i: (0, 0))],
            out_specs=pl.BlockSpec((tm, cp), lambda i: (i, 0))),
        compiler_params=pltpu.CompilerParams(
            dimension_semantics=("parallel",),
            vmem_limit_bytes=VMEM_LIMIT),
    )(y2, s2, t2, sc, ssc, tsc)


# ----------------------------------------------------------------------------
# Glue: im2col patch extraction on the bf16 NHWC activation (slices/concat
# only; the patch matrix is written once, at half width).
# ----------------------------------------------------------------------------
def _im2col(x_nhwc, ksize, stride, pad):
    n, h, w, c = x_nhwc.shape
    xp = jnp.pad(x_nhwc, ((0, 0), (pad, pad), (pad, pad), (0, 0)))
    ho = (h + 2 * pad - ksize) // stride + 1
    wo = (w + 2 * pad - ksize) // stride + 1
    cols = []
    for dy in range(ksize):
        for dx in range(ksize):
            cols.append(
                xp[:, dy:dy + (ho - 1) * stride + 1:stride,
                      dx:dx + (wo - 1) * stride + 1:stride, :])
    # last-dim ordering (dy, dx, c_in) matches the weight reshape below
    p = jnp.concatenate(cols, axis=-1)
    return p.reshape(n * ho * wo, ksize * ksize * c), ho, wo


# ----------------------------------------------------------------------------
# ResidualBlock forward
# ----------------------------------------------------------------------------
def residual_block_forward(x_nchw, params, stride, *, tm=256, tk=256):
    (w1, g1, b1, w2, g2, b2, wsc, gsc, bsc) = params
    # NCHW -> NHWC, cast to bf16 ONCE: every downstream matmul operand
    # (including the 9x-expanded im2col tensors) is materialized at half width.
    x = jnp.transpose(x_nchw, (0, 2, 3, 1)).astype(jnp.bfloat16)
    n, h, w, cin = x.shape
    cout = w1.shape[-1]
    cp = _round_up(cout, LANES)

    # conv1 (3x3, stride, pad=1) -> bn1 stats -> bn1-apply + relu (bf16 act)
    p1, ho, wo = _im2col(x, 3, stride, 1)
    m1 = p1.shape[0]
    y1_raw, c1_sum, c1_sq = _matmul_stats(p1, w1.reshape(9 * cin, cout),
                                          tm=tm, tk=tk)
    s1, t1 = _bn_scale_shift(c1_sum, c1_sq, m1, g1, b1, cp)
    y1_act = _bn_relu(y1_raw, s1, t1)
    y1_act = y1_act[:m1, :cout].reshape(n, ho, wo, cout)   # bf16 conv2 operand

    # conv2 (3x3, stride=1, pad=1) -> bn2 stats (apply deferred to epilogue)
    p2, _, _ = _im2col(y1_act, 3, 1, 1)
    m2 = p2.shape[0]
    y2_raw, c2_sum, c2_sq = _matmul_stats(p2, w2.reshape(9 * cout, cout),
                                          tm=tm, tk=tk)
    s2, t2 = _bn_scale_shift(c2_sum, c2_sq, m2, g2, b2, cp)
    mp2 = y2_raw.shape[0]

    # shortcut
    if wsc is not None:  # projection: 1x1 conv (stride) + bn (apply in epilogue)
        ps, _, _ = _im2col(x, 1, stride, 0)
        ysc, cs_sum, cs_sq = _matmul_stats(ps, wsc.reshape(cin, cout),
                                           tm=tm, tk=tk)
        ssc, tsc = _bn_scale_shift(cs_sum, cs_sq, m2, gsc, bsc, cp)
    else:  # identity: sc = x (bf16, no f32 copy), scale 1 / shift 0
        ysc = x.reshape(n * h * w, cin)
        if ysc.shape != (mp2, cp):
            ysc = jnp.pad(ysc, ((0, mp2 - n * h * w), (0, cp - cin)))
        ssc = jnp.ones((1, cp), jnp.float32)
        tsc = jnp.zeros((1, cp), jnp.float32)

    # fused epilogue: bn2-apply + shortcut-bn-apply + add + relu (f32 out)
    out = _bn2_add_relu(y2_raw, s2, t2, ysc, ssc, tsc)
    out = out[:m2, :cout].reshape(n, ho, wo, cout)
    # NHWC -> NCHW to match the PyTorch module's output layout.
    return jnp.transpose(out, (0, 3, 1, 2))


# ----------------------------------------------------------------------------
# Pure-JAX reference (bf16 matmul operands, f32 accumulation / BN math).
# The kernel additionally rounds the conv outputs (y1/y2) to bf16 in HBM
# before BN-apply, so tolerances are set to 2e-2.
# ----------------------------------------------------------------------------
def _ref_forward(x_nchw, params, stride):
    (w1, g1, b1, w2, g2, b2, wsc, gsc, bsc) = params
    x = jnp.transpose(x_nchw, (0, 2, 3, 1)).astype(jnp.bfloat16).astype(jnp.float32)

    def conv(v, wgt, s, pad):
        return jax.lax.conv_general_dilated(
            v.astype(jnp.bfloat16), wgt.astype(jnp.bfloat16), (s, s),
            ((pad, pad), (pad, pad)),
            dimension_numbers=("NHWC", "HWIO", "NHWC"),
            preferred_element_type=jnp.float32)

    def bn(v, g, b):
        m = jnp.mean(v, axis=(0, 1, 2), keepdims=True)
        var = jnp.mean((v - m) ** 2, axis=(0, 1, 2), keepdims=True)
        return (v - m) * jax.lax.rsqrt(var + EPS) * g.reshape(1, 1, 1, -1) \
            + b.reshape(1, 1, 1, -1)

    y = jax.nn.relu(bn(conv(x, w1, stride, 1), g1, b1))
    y = bn(conv(y, w2, 1, 1), g2, b2)
    if wsc is not None:
        s = bn(conv(x, wsc.reshape(1, 1, *wsc.shape), stride, 0), gsc, bsc)
    else:
        s = x
    return jnp.transpose(jax.nn.relu(y + s), (0, 3, 1, 2))


# ----------------------------------------------------------------------------
def make_params(key, cin, cout, stride):
    ks = jax.random.split(key, 9)
    w1 = jax.random.normal(ks[0], (3, 3, cin, cout), jnp.float32) * (2.0 / (9 * cin)) ** 0.5
    w2 = jax.random.normal(ks[1], (3, 3, cout, cout), jnp.float32) * (2.0 / (9 * cout)) ** 0.5
    g1 = 1.0 + 0.1 * jax.random.normal(ks[2], (1, cout), jnp.float32)
    b1 = 0.1 * jax.random.normal(ks[3], (1, cout), jnp.float32)
    g2 = 1.0 + 0.1 * jax.random.normal(ks[4], (1, cout), jnp.float32)
    b2 = 0.1 * jax.random.normal(ks[5], (1, cout), jnp.float32)
    if stride != 1 or cin != cout:
        wsc = jax.random.normal(ks[6], (cin, cout), jnp.float32) * (2.0 / cin) ** 0.5
        gsc = 1.0 + 0.1 * jax.random.normal(ks[7], (1, cout), jnp.float32)
        bsc = 0.1 * jax.random.normal(ks[8], (1, cout), jnp.float32)
    else:
        wsc, gsc, bsc = None, None, None
    return (w1, g1, b1, w2, g2, b2, wsc, gsc, bsc)


if __name__ == "__main__":
    key = jax.random.PRNGKey(0)

    # Case 1: projection shortcut (stride 2, channel expansion)
    N, CIN, COUT, H, W, STRIDE = 2, 4, 8, 16, 16, 2
    k1, k2, k3, k4 = jax.random.split(key, 4)
    x = jax.random.normal(k1, (N, CIN, H, W), jnp.float32)
    params = make_params(k2, CIN, COUT, STRIDE)
    out = jax.block_until_ready(residual_block_forward(x, params, STRIDE))
    ref = jax.block_until_ready(_ref_forward(x, params, STRIDE))
    assert out.shape == (N, COUT, H // STRIDE, W // STRIDE), out.shape
    assert jnp.allclose(out, ref, atol=2e-2, rtol=2e-2), \
        float(jnp.max(jnp.abs(out - ref)))

    # Case 2: identity shortcut (stride 1, same channels)
    N2, C2, H2, W2 = 2, 8, 16, 16
    x2 = jax.random.normal(k3, (N2, C2, H2, W2), jnp.float32)
    params2 = make_params(k4, C2, C2, 1)
    out2 = jax.block_until_ready(residual_block_forward(x2, params2, 1))
    ref2 = jax.block_until_ready(_ref_forward(x2, params2, 1))
    assert out2.shape == (N2, C2, H2, W2), out2.shape
    assert jnp.allclose(out2, ref2, atol=2e-2, rtol=2e-2), \
        float(jnp.max(jnp.abs(out2 - ref2)))

    print("KERNEL_OK")
</pallas_src>

<mosaic_0001>
module attributes {stable_mosaic.version = 11 : i64} {
  func.func @_mm_stats_kernel(%arg0: i32, %arg1: i32, %arg2: memref<256x128xbf16, #tpu.memory_space<vmem>>, %arg3: memref<128x128xbf16, #tpu.memory_space<vmem>>, %arg4: memref<256x128xbf16, #tpu.memory_space<vmem>>, %arg5: memref<8x128xf32, #tpu.memory_space<vmem>>, %arg6: memref<256x128xf32, #tpu.memory_space<vmem>>) attributes {dimension_semantics = [#tpu.dimension_semantics<parallel>, #tpu.dimension_semantics<arbitrary>], iteration_bounds = array<i64: 2, 1>, scalar_prefetch = 0 : i64, scratch_operands = 1 : i64, tpu.core_type = #tpu.core_type<tc>, window_params = [{transform_indices = @transform_0, window_bounds = array<i64: 256, 128>}, {transform_indices = @transform_1, window_bounds = array<i64: 128, 128>}, {transform_indices = @transform_2, window_bounds = array<i64: 256, 128>}, {transform_indices = @transform_3, window_bounds = array<i64: 8, 128>}]} {
    %c0_i32 = arith.constant 0 : i32
    %0 = arith.cmpi eq, %arg1, %c0_i32 : i32
    %1 = arith.extui %0 : i1 to i32
    %c0_i32_0 = arith.constant 0 : i32
    %2 = arith.cmpi ne, %1, %c0_i32_0 : i32
    scf.if %2 {
      %cst_10 = arith.constant 0.000000e+00 : f32
      %12 = vector.broadcast %cst_10 : f32 to vector<256x128xf32>
      %c0_11 = arith.constant 0 : index
      %c0_12 = arith.constant 0 : index
      %13 = vector.load %arg6[%c0_11, %c0_12] : memref<256x128xf32, #tpu.memory_space<vmem>>, vector<256x128xf32>
      tpu.vector_store %arg6[%c0_11, %c0_12], %12 {strides = array<i32>} : memref<256x128xf32, #tpu.memory_space<vmem>>, vector<256x128xf32>,
    } else {
    }
    %c0 = arith.constant 0 : index
    %c0_1 = arith.constant 0 : index
    %3 = vector.load %arg6[%c0, %c0_1] : memref<256x128xf32, #tpu.memory_space<vmem>>, vector<256x128xf32>
    %c0_2 = arith.constant 0 : index
    %c0_3 = arith.constant 0 : index
    %4 = vector.load %arg2[%c0_2, %c0_3] : memref<256x128xbf16, #tpu.memory_space<vmem>>, vector<256x128xbf16>
    %c0_4 = arith.constant 0 : index
    %c0_5 = arith.constant 0 : index
    %5 = vector.load %arg3[%c0_4, %c0_5] : memref<128x128xbf16, #tpu.memory_space<vmem>>, vector<128x128xbf16>
    %cst = arith.constant dense<0.000000e+00> : vector<256x128xf32>
    %6 = tpu.matmul %4, %5, %cst {dimension_numbers = #tpu.dot_dimension_numbers<[1], [0], [0], [1], [0, 0, 1, 1], [], []>} : vector<256x128xbf16>, vector<128x128xbf16>, vector<256x128xf32> -> vector<256x128xf32>
    %7 = arith.addf %3, %6 : vector<256x128xf32>
    %c0_6 = arith.constant 0 : index
    %c0_7 = arith.constant 0 : index
    %8 = vector.load %arg6[%c0_6, %c0_7] : memref<256x128xf32, #tpu.memory_space<vmem>>, vector<256x128xf32>
    tpu.vector_store %arg6[%c0_6, %c0_7], %7 {strides = array<i32>} : memref<256x128xf32, #tpu.memory_space<vmem>>, vector<256x128xf32>,
    %c0_i32_8 = arith.constant 0 : i32
    %9 = arith.cmpi eq, %arg1, %c0_i32_8 : i32
    %10 = arith.extui %9 : i1 to i32
    %c0_i32_9 = arith.constant 0 : i32
    %11 = arith.cmpi ne, %10, %c0_i32_9 : i32
    scf.if %11 {
      %c0_10 = arith.constant 0 : index
      %c0_11 = arith.constant 0 : index
      %12 = vector.load %arg6[%c0_10, %c0_11] : memref<256x128xf32, #tpu.memory_space<vmem>>, vector<256x128xf32>
      %13 = arith.truncf %12 : vector<256x128xf32> to vector<256x128xbf16>
      %c0_12 = arith.constant 0 : index
      %c0_13 = arith.constant 0 : index
      %14 = vector.load %arg4[%c0_12, %c0_13] : memref<256x128xbf16, #tpu.memory_space<vmem>>, vector<256x128xbf16>
      tpu.vector_store %arg4[%c0_12, %c0_13], %13 {strides = array<i32>} : memref<256x128xbf16, #tpu.memory_space<vmem>>, vector<256x128xbf16>,
      %cst_14 = arith.constant dense<0.000000e+00> : vector<128xf32>
      %15 = vector.multi_reduction <add>, %12, %cst_14 [0] : vector<256x128xf32> to vector<128xf32>
      %16 = vector.shape_cast %15 : vector<128xf32> to vector<1x128xf32>
      %17 = arith.mulf %12, %12 : vector<256x128xf32>
      %cst_15 = arith.constant dense<0.000000e+00> : vector<128xf32>
      %18 = vector.multi_reduction <add>, %17, %cst_15 [0] : vector<256x128xf32> to vector<128xf32>
      %19 = vector.shape_cast %18 : vector<128xf32> to vector<1x128xf32>
      %20 = tpu.iota {dimensions = array<i32: 0>} : vector<8x128xi32>
      %c0_i32_16 = arith.constant 0 : i32
      %21 = vector.broadcast %c0_i32_16 : i32 to vector<8x128xi32>
      %22 = arith.cmpi eq, %20, %21 : vector<8x128xi32>
      %c1_i32 = arith.constant 1 : i32
      %23 = vector.broadcast %c1_i32 : i32 to vector<8x128xi32>
      %24 = arith.cmpi eq, %20, %23 : vector<8x128xi32>
      %cst_17 = arith.constant 0.000000e+00 : f32
      %25 = vector.shape_cast %19 : vector<1x128xf32> to vector<1x128xf32>
      %26 = vector.broadcast %25 : vector<1x128xf32> to vector<8x128xf32>
      %27 = vector.broadcast %cst_17 : f32 to vector<8x128xf32>
      %28 = arith.select %24, %26, %27 : vector<8x128xi1>, vector<8x128xf32>
      %29 = vector.shape_cast %16 : vector<1x128xf32> to vector<1x128xf32>
      %30 = vector.broadcast %29 : vector<1x128xf32> to vector<8x128xf32>
      %31 = arith.select %22, %30, %28 : vector<8x128xi1>, vector<8x128xf32>
      %c0_18 = arith.constant 0 : index
      %c0_19 = arith.constant 0 : index
      %32 = vector.load %arg5[%c0_18, %c0_19] : memref<8x128xf32, #tpu.memory_space<vmem>>, vector<8x128xf32>
      tpu.vector_store %arg5[%c0_18, %c0_19], %31 {strides = array<i32>} : memref<8x128xf32, #tpu.memory_space<vmem>>, vector<8x128xf32>,
    } else {
    }
    return
  }
  func.func @transform_0(%arg0: i32, %arg1: i32) -> (i32, i32) {
    %c0_i32 = arith.constant 0 : i32
    return %arg0, %arg1 : i32, i32
  }
  func.func @transform_1(%arg0: i32, %arg1: i32) -> (i32, i32) {
    %c0_i32 = arith.constant 0 : i32
    %c0_i32_0 = arith.constant 0 : i32
    return %arg1, %c0_i32 : i32, i32
  }
  func.func @transform_2(%arg0: i32, %arg1: i32) -> (i32, i32) {
    %c0_i32 = arith.constant 0 : i32
    %c0_i32_0 = arith.constant 0 : i32
    return %arg0, %c0_i32 : i32, i32
  }
  func.func @transform_3(%arg0: i32, %arg1: i32) -> (i32, i32) {
    %c0_i32 = arith.constant 0 : i32
    %c0_i32_0 = arith.constant 0 : i32
    return %arg0, %c0_i32 : i32, i32
  }
}

</mosaic_0001>

<llo_original>
// kernel: tpu_custom_call.1
$region0: #{tpu_custom_call.1}
  #allocation0 [shape = 'u32[]', space=smem, size = 0x4, offset = 0x4, fixed_abs, tag = 'smem constant byte address 0x4 - core index']
  #allocation1 [shape = 'u32[72,128]{1,0:T(1,128)}', space=vmem, size = 0x9000, scoped, tag = 'internal scratch']
  #allocation2 [shape = 'f32[256,128]{1,0:T(8,128)}', space=vmem, size = 0x20000, scoped, tag = 'scratch operand']
  %s0 = inlined_call_operand.hbm [shape: bf16[512,128], index: 0, kind: input, shape index: {}]
  %s1 = inlined_call_operand.hbm [shape: bf16[128,128], index: 1, kind: input, shape index: {}]
  %s2 = inlined_call_operand.hbm [shape: bf16[512,128], index: 2, kind: output, shape index: {0}]
  %s3 = inlined_call_operand.hbm [shape: f32[16,128], index: 3, kind: output, shape index: {1}]
  %4 = xla_tuple %s2, %s3
  %s5 = sld [smem:[#allocation0]]
  $region65: #{tpu_custom_call.1} parent=0
    _
  %s7 = ssub.s32 1, %s5
  %s8 = scalar_select 0, %s7, %s5
  $region1: #{tpu_custom_call.1} parent=0
    #allocation3 [shape = 'u8[131072]{0}', space=vmem, size = 0x20000, scoped, tag = 'input window, operand 0']
    #allocation4 [shape = 's32[2]{0}', space=sflag, size = 0x8, scoped, tag = 'scoped memory for tpu_custom_call.1']
    #allocation5 [shape = 's32[2]{0}', space=sflag, size = 0x8, scoped, tag = 'scoped memory for tpu_custom_call.1']
    #allocation6 [shape = 'u8[32768]{0}', space=vmem, size = 0x8000, scoped, tag = 'input window, operand 1, single buffered']
    #allocation7 [shape = 's32[1]{0}', space=sflag, size = 0x4, scoped, tag = 'scoped memory for tpu_custom_call.1']
    #allocation8 [shape = 'u8[131072]{0}', space=vmem, size = 0x20000, scoped, tag = 'output window, operand 0']
    #allocation9 [shape = 'u8[8192]{0}', space=vmem, size = 0x2000, scoped, tag = 'output window, operand 1']
    #allocation10 [shape = 's32[2]{0}', space=sflag, size = 0x8, scoped, tag = 'scoped memory for tpu_custom_call.1']
    %9 = vsyncpa [#allocation4], 0
    %s10 = scalar_lea.sflag [#allocation4], 1
    %11 = vsyncpa %s10, 0
    %12 = vsyncpa [#allocation7], 0
    %13 = vsyncpa [#allocation5], 0
    %s14 = scalar_lea.sflag [#allocation5], 1
    %15 = vsyncpa %s14, 0
    %16 = vsyncpa [#allocation10], 0
    %s17 = scalar_lea.sflag [#allocation10], 1
    %18 = vsyncpa %s17, 0
    loop: start=0, step=1, limit=4
    $region2: #{tpu_custom_call.1} parent=1 // loop_pre_header
      _
    $region3: #{tpu_custom_call.1} parent=1 // loop_header
      %s20 = sphi 0, %s24
      %p21 = scmp.ge.s32.totalorder %s20, 4
      %s27 = sphi 0, %s39
      %s28 = sphi 0, %s35
      %s29 = sphi 0, %s27
      %s30 = sphi 0, %s28
      %s31 = sphi 0, %s29
      %s32 = sphi 0, %s30
      %s44 = sphi 0, %s46
      %s47 = sphi 0, %s44
      %s48 = sphi 0, %s47
      %s64 = sphi 0, %s48
      %s70 = sphi 0, %s72
      %s73 = sphi 0, %s70
      %s74 = sphi 0, %s73
      %s90 = sphi 0, %s74
      %s96 = sphi 0, %s98
      %s99 = sphi 0, %s96
      %s100 = sphi 0, %s99
      %s116 = sphi 0, %s100
      %s122 = sphi 0, %s124
      %s125 = sphi 0, %s122
      %s126 = sphi 0, %s125
      %s142 = sphi 0, %s126
    $region4: #{tpu_custom_call.1} parent=1 // loop_header_branch
      %23 = sbr.rel (%p21) target = $region8
    $region5: #{tpu_custom_call.1} parent=1 // loop_body
      %s25 = ssub.s32 %s20, 1
      %s26 = ssub.s32 %s20, 2
      %s33 = sadd.s32 1, %s28
      %p34 = scmp.ge.s32.totalorder %s33, 1
      %s35 = scalar_select %p34, 0, %s33
      %s36 = sadd.s32 1, %s27
      %s37 = scalar_select %p34, %s36, %s27
      %p38 = scmp.ge.s32.totalorder %s37, 2
      %s39 = scalar_select %p38, 0, %s37
      %s40 = ssub.s32 %s27, %s39
      %s41 = ssub.s32 %s28, %s35
      %s42 = sor.u32 %s40, %s41
      %p43 = scmp.eq.s32.totalorder %s42, 0
      %s45 = sadd.s32 %s44, 1
      %s46 = scalar_select %p43, %s44, %s45
      %p49 = pneg %p43
      %p50 = scmp.eq.s32.totalorder %s20, 1
      %p51 = por %p49, %p50
      %p52 = scmp.ne.s32.totalorder %s44, %s47
      %p53 = scmp.eq.s32.totalorder %s20, 0
      %p54 = por %p52, %p53
      %p55 = scmp.ne.s32.totalorder %s44, %s47
      %p56 = scmp.eq.s32.totalorder %s25, 1
      %p57 = por %p55, %p56
      %p58 = scmp.ne.s32.totalorder %s47, %s48
      %p59 = scmp.eq.s32.totalorder %s25, 0
      %p60 = por %p58, %p59
      %p61 = scmp.ne.s32.totalorder %s47, %s48
      %p62 = scmp.eq.s32.totalorder %s26, 1
      %p63 = por %p61, %p62
      %p65 = scmp.ne.s32.totalorder %s48, %s64
      %p66 = scmp.eq.s32.totalorder %s26, 0
      %p67 = por %p65, %p66
      %s68 = ssub.s32 %s28, %s35
      %p69 = scmp.eq.s32.totalorder %s68, 0
      %s71 = sadd.s32 %s70, 1
      %s72 = scalar_select %p69, %s70, %s71
      %p75 = pneg %p69
      %p76 = scmp.eq.s32.totalorder %s20, 1
      %p77 = por %p75, %p76
      %p78 = scmp.ne.s32.totalorder %s70, %s73
      %p79 = scmp.eq.s32.totalorder %s20, 0
      %p80 = por %p78, %p79
      %p81 = scmp.ne.s32.totalorder %s70, %s73
      %p82 = scmp.eq.s32.totalorder %s25, 1
      %p83 = por %p81, %p82
      %p84 = scmp.ne.s32.totalorder %s73, %s74
      %p85 = scmp.eq.s32.totalorder %s25, 0
      %p86 = por %p84, %p85
      %p87 = scmp.ne.s32.totalorder %s73, %s74
      %p88 = scmp.eq.s32.totalorder %s26, 1
      %p89 = por %p87, %p88
      %p91 = scmp.ne.s32.totalorder %s74, %s90
      %p92 = scmp.eq.s32.totalorder %s26, 0
      %p93 = por %p91, %p92
      %s94 = ssub.s32 %s27, %s39
      %p95 = scmp.eq.s32.totalorder %s94, 0
      %s97 = sadd.s32 %s96, 1
      %s98 = scalar_select %p95, %s96, %s97
      %p101 = pneg %p95
      %p102 = scmp.eq.s32.totalorder %s20, 1
      %p103 = por %p101, %p102
      %p104 = scmp.ne.s32.totalorder %s96, %s99
      %p105 = scmp.eq.s32.totalorder %s20, 0
      %p106 = por %p104, %p105
      %p107 = scmp.ne.s32.totalorder %s96, %s99
      %p108 = scmp.eq.s32.totalorder %s25, 1
      %p109 = por %p107, %p108
      %p110 = scmp.ne.s32.totalorder %s99, %s100
      %p111 = scmp.eq.s32.totalorder %s25, 0
      %p112 = por %p110, %p111
      %p113 = scmp.ne.s32.totalorder %s99, %s100
      %p114 = scmp.eq.s32.totalorder %s26, 1
      %p115 = por %p113, %p114
      %p117 = scmp.ne.s32.totalorder %s100, %s116
      %p118 = scmp.eq.s32.totalorder %s26, 0
      %p119 = por %p117, %p118
      %s120 = ssub.s32 %s27, %s39
      %p121 = scmp.eq.s32.totalorder %s120, 0
      %s123 = sadd.s32 %s122, 1
      %s124 = scalar_select %p121, %s122, %s123
      %p127 = pneg %p121
      %p128 = scmp.eq.s32.totalorder %s20, 1
      %p129 = por %p127, %p128
      %p130 = scmp.ne.s32.totalorder %s122, %s125
      %p131 = scmp.eq.s32.totalorder %s20, 0
      %p132 = por %p130, %p131
      %p133 = scmp.ne.s32.totalorder %s122, %s125
      %p134 = scmp.eq.s32.totalorder %s25, 1
      %p135 = por %p133, %p134
      %p136 = scmp.ne.s32.totalorder %s125, %s126
      %p137 = scmp.eq.s32.totalorder %s25, 0
      %p138 = por %p136, %p137
      %p139 = scmp.ne.s32.totalorder %s125, %s126
      %p140 = scmp.eq.s32.totalorder %s26, 1
      %p141 = por %p139, %p140
      %p143 = scmp.ne.s32.totalorder %s126, %s142
      %p144 = scmp.eq.s32.totalorder %s26, 0
      %p145 = por %p143, %p144
      %p146 = scmp.le.s32.totalorder 1, %s20
      %p147 = scmp.lt.s32.totalorder %s20, 3
      %p148 = pnand %p146, %p147
      %p149 = pneg %p148
      // Predicated region
      $region9: #{tpu_custom_call.1} parent=5 // pred_check
        _
      $region10: #{tpu_custom_call.1} parent=5 // pred_check_branch
        %151 = sbr.rel (%p148) target = $region12
      $region11: #{tpu_custom_call.1} parent=5 // pred_region
        %s152 = ssub.s32 %s20, 1
        // Predicated region
        $region13: #{tpu_custom_call.1} parent=11 // pred_check
          %p153 = pneg %p86
        $region14: #{tpu_custom_call.1} parent=11 // pred_check_branch
          %155 = sbr.rel (%p153) target = $region16
        $region15: #{tpu_custom_call.1} parent=11 // pred_region
          %s156 = smul.u32 16, %s30
          %158 = vsyncadd [#allocation7], 0
          %s159 = smul.addr %s156, 4
          %s160 = scalar_lea.hbm %s1, %s159
          %s161 = sshll.u32 %s160, 4
          %s162 = int_to_ptr.hbm [resolvable:$true] %s161
          %s163 = sshll.u32 [#allocation6], 4
          %s164 = int_to_ptr.vmem [resolvable:$true] %s163
          %169 = dma.hbm_to_vmem [thread:$0]  %s162, 1024, %s164, [#allocation7], 64, 64, 4
        $region16: #{tpu_custom_call.1} parent=11 // pred_fallthru
          _
      $region12: #{tpu_custom_call.1} parent=5 // pred_fallthru
        _
      %p170 = scmp.lt.s32.totalorder %s20, 2
      // Predicated region
      $region17: #{tpu_custom_call.1} parent=5 // pred_check
        %p171 = pneg %p170
      $region18: #{tpu_custom_call.1} parent=5 // pred_check_branch
        %173 = sbr.rel (%p171) target = $region20
      $region19: #{tpu_custom_call.1} parent=5 // pred_region
        // Predicated region
        $region21: #{tpu_custom_call.1} parent=19 // pred_check
          %p174 = pneg %p54
        $region22: #{tpu_custom_call.1} parent=19 // pred_check_branch
          %176 = sbr.rel (%p174) target = $region24
        $region23: #{tpu_custom_call.1} parent=19 // pred_region
          %s177 = sand.u32 %s44, 1
          %s178 = scalar_lea.sflag [#allocation4], %s177
          %s179 = sand.u32 %s44, 1
          %s180 = smul.addr %s179, 128
          %s181 = scalar_lea.vmem [#allocation3], %s180
          %s182 = smul.u32 32, %s27
          %184 = vsyncadd %s178, 0
          %s185 = sadd.s32 %s28, %s182
          %s186 = smul.addr %s185, 4
          %s187 = scalar_lea.hbm %s0, %s186
          %s188 = sshll.u32 %s187, 4
          %s189 = int_to_ptr.hbm [resolvable:$true] %s188
          %s190 = sshll.u32 %s181, 4
          %s191 = int_to_ptr.vmem [resolvable:$true] %s190
          %196 = dma.hbm_to_vmem [thread:$0]  %s189, 2048, %s191, %s178, 64, 64, 4
        $region24: #{tpu_custom_call.1} parent=19 // pred_fallthru
          _
      $region20: #{tpu_custom_call.1} parent=5 // pred_fallthru
        _
      %p197 = scmp.le.s32.totalorder 1, %s20
      %p198 = scmp.lt.s32.totalorder %s20, 3
      %p199 = pnand %p197, %p198
      %p200 = pneg %p199
      // Predicated region
      $region25: #{tpu_custom_call.1} parent=5 // pred_check
        _
      $region26: #{tpu_custom_call.1} parent=5 // pred_check_branch
        %202 = sbr.rel (%p199) target = $region28
      $region27: #{tpu_custom_call.1} parent=5 // pred_region
        %s203 = ssub.s32 %s20, 1
        %s204 = sand.u32 %s47, 1
        %s205 = scalar_lea.sflag [#allocation4], %s204
        %s206 = sand.u32 %s47, 1
        %s207 = smul.addr %s206, 128
        %s208 = scalar_lea.vmem [#allocation3], %s207
        // Predicated region
        $region29: #{tpu_custom_call.1} parent=27 // pred_check
          %p209 = pneg %p60
        $region30: #{tpu_custom_call.1} parent=27 // pred_check_branch
          %211 = sbr.rel (%p209) target = $region32
        $region31: #{tpu_custom_call.1} parent=27 // pred_region
          %213 = dma.done %s205, 2048
        $region32: #{tpu_custom_call.1} parent=27 // pred_fallthru
          _
        // Predicated region
        $region33: #{tpu_custom_call.1} parent=27 // pred_check
          %p214 = pneg %p86
        $region34: #{tpu_custom_call.1} parent=27 // pred_check_branch
          %216 = sbr.rel (%p214) target = $region36
        $region35: #{tpu_custom_call.1} parent=27 // pred_region
          %218 = dma.done [#allocation7], 1024
        $region36: #{tpu_custom_call.1} parent=27 // pred_fallthru
          _
        %s219 = sand.u32 %s47, 1
        %s220 = scalar_lea.sflag [#allocation4], %s219
        %s221 = sand.u32 %s47, 1
        %s222 = smul.addr %s221, 128
        %s223 = scalar_lea.vmem [#allocation3], %s222
        %p224 = pneg %p60
        %p225 = pneg %p57
        %p226 = pneg %p86
        %p227 = pneg %p83
        %p228 = pneg %p112
        %p229 = pneg %p109
        %s230 = sand.u32 %s99, 1
        %s231 = scalar_lea.sflag [#allocation5], %s230
        %s232 = sand.u32 %s99, 1
        %s233 = smul.addr %s232, 128
        %s234 = scalar_lea.vmem [#allocation8], %s233
        %p235 = pneg %p138
        %p236 = pneg %p135
        %s237 = sand.u32 %s125, 1
        %s238 = scalar_lea.sflag [#allocation10], %s237
        %s239 = sand.u32 %s125, 1
        %s240 = smul.addr %s239, 8
        %s241 = scalar_lea.vmem [#allocation9], %s240
        %s242 = smul.u32 32, %s29
        %s243 = smul.u32 16, %s30
        %s244 = smul.u32 32, %s29
        %p245 = scmp.eq.s32.totalorder %s30, 0
        // Predicated region
        $region37: #{tpu_custom_call.1} parent=27 // pred_check
          %p246 = pneg %p245
        $region38: #{tpu_custom_call.1} parent=27 // pred_check_branch
          %248 = sbr.rel (%p246) target = $region40
        $region39: #{tpu_custom_call.1} parent=27 // pred_region
          %249 = vst [vmem:[#allocation2] sm:$0xff] 0.0
          %250 = vst [vmem:[#allocation2 + $0x8] sm:$0xff] 0.0
          %251 = vst [vmem:[#allocation2 + $0x10] sm:$0xff] 0.0
          %252 = vst [vmem:[#allocation2 + $0x18] sm:$0xff] 0.0
          %253 = vst [vmem:[#allocation2 + $0x20] sm:$0xff] 0.0
          %254 = vst [vmem:[#allocation2 + $0x28] sm:$0xff] 0.0
          %255 = vst [vmem:[#allocation2 + $0x30] sm:$0xff] 0.0
          %256 = vst [vmem:[#allocation2 + $0x38] sm:$0xff] 0.0
          %257 = vst [vmem:[#allocation2 + $0x40] sm:$0xff] 0.0
          %258 = vst [vmem:[#allocation2 + $0x48] sm:$0xff] 0.0
          %259 = vst [vmem:[#allocation2 + $0x50] sm:$0xff] 0.0
          %260 = vst [vmem:[#allocation2 + $0x58] sm:$0xff] 0.0
          %261 = vst [vmem:[#allocation2 + $0x60] sm:$0xff] 0.0
          %262 = vst [vmem:[#allocation2 + $0x68] sm:$0xff] 0.0
          %263 = vst [vmem:[#allocation2 + $0x70] sm:$0xff] 0.0
          %264 = vst [vmem:[#allocation2 + $0x78] sm:$0xff] 0.0
          %265 = vst [vmem:[#allocation2 + $0x80] sm:$0xff] 0.0
          %266 = vst [vmem:[#allocation2 + $0x88] sm:$0xff] 0.0
          %267 = vst [vmem:[#allocation2 + $0x90] sm:$0xff] 0.0
          %268 = vst [vmem:[#allocation2 + $0x98] sm:$0xff] 0.0
          %269 = vst [vmem:[#allocation2 + $0xa0] sm:$0xff] 0.0
          %270 = vst [vmem:[#allocation2 + $0xa8] sm:$0xff] 0.0
          %271 = vst [vmem:[#allocation2 + $0xb0] sm:$0xff] 0.0
          %272 = vst [vmem:[#allocation2 + $0xb8] sm:$0xff] 0.0
          %273 = vst [vmem:[#allocation2 + $0xc0] sm:$0xff] 0.0
          %274 = vst [vmem:[#allocation2 + $0xc8] sm:$0xff] 0.0
          %275 = vst [vmem:[#allocation2 + $0xd0] sm:$0xff] 0.0
          %276 = vst [vmem:[#allocation2 + $0xd8] sm:$0xff] 0.0
          %277 = vst [vmem:[#allocation2 + $0xe0] sm:$0xff] 0.0
          %278 = vst [vmem:[#allocation2 + $0xe8] sm:$0xff] 0.0
          %279 = vst [vmem:[#allocation2 + $0xf0] sm:$0xff] 0.0
          %280 = vst [vmem:[#allocation2 + $0xf8] sm:$0xff] 0.0
        $region40: #{tpu_custom_call.1} parent=27 // pred_fallthru
          _
        %v281 = vld [vmem:[#allocation2] sm:$0xff]
        %v282 = vld [vmem:[#allocation2 + $0x8] sm:$0xff]
        %v283 = vld [vmem:[#allocation2 + $0x10] sm:$0xff]
        %v284 = vld [vmem:[#allocation2 + $0x18] sm:$0xff]
        %v285 = vld [vmem:[#allocation2 + $0x20] sm:$0xff]
        %v286 = vld [vmem:[#allocation2 + $0x28] sm:$0xff]
        %v287 = vld [vmem:[#allocation2 + $0x30] sm:$0xff]
        %v288 = vld [vmem:[#allocation2 + $0x38] sm:$0xff]
        %v289 = vld [vmem:[#allocation2 + $0x40] sm:$0xff]
        %v290 = vld [vmem:[#allocation2 + $0x48] sm:$0xff]
        %v291 = vld [vmem:[#allocation2 + $0x50] sm:$0xff]
        %v292 = vld [vmem:[#allocation2 + $0x58] sm:$0xff]
        %v293 = vld [vmem:[#allocation2 + $0x60] sm:$0xff]
        %v294 = vld [vmem:[#allocation2 + $0x68] sm:$0xff]
        %v295 = vld [vmem:[#allocation2 + $0x70] sm:$0xff]
        %v296 = vld [vmem:[#allocation2 + $0x78] sm:$0xff]
        %v297 = vld [vmem:[#allocation2 + $0x80] sm:$0xff]
        %v298 = vld [vmem:[#allocation2 + $0x88] sm:$0xff]
        %v299 = vld [vmem:[#allocation2 + $0x90] sm:$0xff]
        %v300 = vld [vmem:[#allocation2 + $0x98] sm:$0xff]
        %v301 = vld [vmem:[#allocation2 + $0xa0] sm:$0xff]
        %v302 = vld [vmem:[#allocation2 + $0xa8] sm:$0xff]
        %v303 = vld [vmem:[#allocation2 + $0xb0] sm:$0xff]
        %v304 = vld [vmem:[#allocation2 + $0xb8] sm:$0xff]
        %v305 = vld [vmem:[#allocation2 + $0xc0] sm:$0xff]
        %v306 = vld [vmem:[#allocation2 + $0xc8] sm:$0xff]
        %v307 = vld [vmem:[#allocation2 + $0xd0] sm:$0xff]
        %v308 = vld [vmem:[#allocation2 + $0xd8] sm:$0xff]
        %v309 = vld [vmem:[#allocation2 + $0xe0] sm:$0xff]
        %v310 = vld [vmem:[#allocation2 + $0xe8] sm:$0xff]
        %v311 = vld [vmem:[#allocation2 + $0xf0] sm:$0xff]
        %v312 = vld [vmem:[#allocation2 + $0xf8] sm:$0xff]
        %v313 = vld [vmem:[%s208] sm:$0xf]
        %v314 = vld [vmem:[%s208 + $0x4] sm:$0xf]
        %v315 = vld [vmem:[%s208 + $0x8] sm:$0xf]
        %v316 = vld [vmem:[%s208 + $0xc] sm:$0xf]
        %v317 = vld [vmem:[%s208 + $0x10] sm:$0xf]
        %v318 = vld [vmem:[%s208 + $0x14] sm:$0xf]
        %v319 = vld [vmem:[%s208 + $0x18] sm:$0xf]
        %v320 = vld [vmem:[%s208 + $0x1c] sm:$0xf]
        %v321 = vld [vmem:[%s208 + $0x20] sm:$0xf]
        %v322 = vld [vmem:[%s208 + $0x24] sm:$0xf]
        %v323 = vld [vmem:[%s208 + $0x28] sm:$0xf]
        %v324 = vld [vmem:[%s208 + $0x2c] sm:$0xf]
        %v325 = vld [vmem:[%s208 + $0x30] sm:$0xf]
        %v326 = vld [vmem:[%s208 + $0x34] sm:$0xf]
        %v327 = vld [vmem:[%s208 + $0x38] sm:$0xf]
        %v328 = vld [vmem:[%s208 + $0x3c] sm:$0xf]
        %v329 = vld [vmem:[%s208 + $0x40] sm:$0xf]
        %v330 = vld [vmem:[%s208 + $0x44] sm:$0xf]
        %v331 = vld [vmem:[%s208 + $0x48] sm:$0xf]
        %v332 = vld [vmem:[%s208 + $0x4c] sm:$0xf]
        %v333 = vld [vmem:[%s208 + $0x50] sm:$0xf]
        %v334 = vld [vmem:[%s208 + $0x54] sm:$0xf]
        %v335 = vld [vmem:[%s208 + $0x58] sm:$0xf]
        %v336 = vld [vmem:[%s208 + $0x5c] sm:$0xf]
        %v337 = vld [vmem:[%s208 + $0x60] sm:$0xf]
        %v338 = vld [vmem:[%s208 + $0x64] sm:$0xf]
        %v339 = vld [vmem:[%s208 + $0x68] sm:$0xf]
        %v340 = vld [vmem:[%s208 + $0x6c] sm:$0xf]
        %v341 = vld [vmem:[%s208 + $0x70] sm:$0xf]
        %v342 = vld [vmem:[%s208 + $0x74] sm:$0xf]
        %v343 = vld [vmem:[%s208 + $0x78] sm:$0xf]
        %v344 = vld [vmem:[%s208 + $0x7c] sm:$0xf]
        %v345 = vld [vmem:[#allocation6] sm:$0xf]
        %v346 = vld [vmem:[#allocation6 + $0x4] sm:$0xf]
        %v347 = vld [vmem:[#allocation6 + $0x8] sm:$0xf]
        %v348 = vld [vmem:[#allocation6 + $0xc] sm:$0xf]
        %v349 = vld [vmem:[#allocation6 + $0x10] sm:$0xf]
        %v350 = vld [vmem:[#allocation6 + $0x14] sm:$0xf]
        %v351 = vld [vmem:[#allocation6 + $0x18] sm:$0xf]
        %v352 = vld [vmem:[#allocation6 + $0x1c] sm:$0xf]
        %v353 = vld [vmem:[#allocation6 + $0x20] sm:$0xf]
        %v354 = vld [vmem:[#allocation6 + $0x24] sm:$0xf]
        %v355 = vld [vmem:[#allocation6 + $0x28] sm:$0xf]
        %v356 = vld [vmem:[#allocation6 + $0x2c] sm:$0xf]
        %v357 = vld [vmem:[#allocation6 + $0x30] sm:$0xf]
        %v358 = vld [vmem:[#allocation6 + $0x34] sm:$0xf]
        %v359 = vld [vmem:[#allocation6 + $0x38] sm:$0xf]
        %v360 = vld [vmem:[#allocation6 + $0x3c] sm:$0xf]
        %v393 = vunpack.c.l.b16 %v313
        %v394 = vunpack.c.l.b16 %v314
        %v395 = vunpack.c.l.b16 %v315
        %v396 = vunpack.c.l.b16 %v316
        %v397 = vunpack.c.l.b16 %v317
        %v398 = vunpack.c.l.b16 %v318
        %v399 = vunpack.c.l.b16 %v319
        %v400 = vunpack.c.l.b16 %v320
        %v401 = vunpack.c.l.b16 %v321
        %v402 = vunpack.c.l.b16 %v322
        %v403 = vunpack.c.l.b16 %v323
        %v404 = vunpack.c.l.b16 %v324
        %v405 = vunpack.c.l.b16 %v325
        %v406 = vunpack.c.l.b16 %v326
        %v407 = vunpack.c.l.b16 %v327
        %v408 = vunpack.c.l.b16 %v328
        %v409 = vunpack.c.l.b16 %v329
        %v410 = vunpack.c.l.b16 %v330
        %v411 = vunpack.c.l.b16 %v331
        %v412 = vunpack.c.l.b16 %v332
        %v413 = vunpack.c.l.b16 %v333
        %v414 = vunpack.c.l.b16 %v334
        %v415 = vunpack.c.l.b16 %v335
        %v416 = vunpack.c.l.b16 %v336
        %v417 = vunpack.c.l.b16 %v337
        %v418 = vunpack.c.l.b16 %v338
        %v419 = vunpack.c.l.b16 %v339
        %v420 = vunpack.c.l.b16 %v340
        %v421 = vunpack.c.l.b16 %v341
        %v422 = vunpack.c.l.b16 %v342
        %v423 = vunpack.c.l.b16 %v343
        %v424 = vunpack.c.l.b16 %v344
        %v425 = vpack.c.b16 %v394, %v393
        %v426 = vpack.c.b16 %v396, %v395
        %v427 = vpack.c.b16 %v398, %v397
        %v428 = vpack.c.b16 %v400, %v399
        %v429 = vpack.c.b16 %v402, %v401
        %v430 = vpack.c.b16 %v404, %v403
        %v431 = vpack.c.b16 %v406, %v405
        %v432 = vpack.c.b16 %v408, %v407
        %v433 = vpack.c.b16 %v410, %v409
        %v434 = vpack.c.b16 %v412, %v411
        %v435 = vpack.c.b16 %v414, %v413
        %v436 = vpack.c.b16 %v416, %v415
        %v437 = vpack.c.b16 %v418, %v417
        %v438 = vpack.c.b16 %v420, %v419
        %v439 = vpack.c.b16 %v422, %v421
        %v440 = vpack.c.b16 %v424, %v423
        %v473 = vunpack.c.l.b16 %v345
        %v474 = vunpack.c.l.b16 %v346
        %v475 = vunpack.c.l.b16 %v347
        %v476 = vunpack.c.l.b16 %v348
        %v477 = vunpack.c.l.b16 %v349
        %v478 = vunpack.c.l.b16 %v350
        %v479 = vunpack.c.l.b16 %v351
        %v480 = vunpack.c.l.b16 %v352
        %v481 = vunpack.c.l.b16 %v353
        %v482 = vunpack.c.l.b16 %v354
        %v483 = vunpack.c.l.b16 %v355
        %v484 = vunpack.c.l.b16 %v356
        %v485 = vunpack.c.l.b16 %v357
        %v486 = vunpack.c.l.b16 %v358
        %v487 = vunpack.c.l.b16 %v359
        %v488 = vunpack.c.l.b16 %v360
        %v489 = vpack.c.b16 %v474, %v473
        %v490 = vpack.c.b16 %v476, %v475
        %v491 = vpack.c.b16 %v478, %v477
        %v492 = vpack.c.b16 %v480, %v479
        %v493 = vpack.c.b16 %v482, %v481
        %v494 = vpack.c.b16 %v484, %v483
        %v495 = vpack.c.b16 %v486, %v485
        %v496 = vpack.c.b16 %v488, %v487
        %505 = vmatpush.bf16.msra.mxu0 %v496
        %506 = vmatpush.bf16.msra.mxu0 %v495
        %507 = vmatpush.bf16.msra.mxu0 %v494
        %508 = vmatpush.bf16.msra.mxu0 %v493
        %509 = vmatpush.bf16.msra.mxu0 %v492
        %510 = vmatpush.bf16.msra.mxu0 %v491
        %511 = vmatpush.bf16.msra.mxu0 %v490
        %512 = vmatpush.bf16.msra.mxu0 %v489
        %513 = vmatmul.bf16.gmra.mxu0 %v425
        %v514 = vpop.f32.mrf.mxu0
        %v515 = vadd.f32 0.0, %v514
        %v516 = vpop.f32.mrf.mxu0
        %v517 = vadd.f32 0.0, %v516
        %518 = vmatmul.bf16.gmra.mxu0 %v426
        %v519 = vpop.f32.mrf.mxu0
        %v520 = vadd.f32 0.0, %v519
        %v521 = vpop.f32.mrf.mxu0
        %v522 = vadd.f32 0.0, %v521
        %523 = vmatmul.bf16.gmra.mxu0 %v427
        %v524 = vpop.f32.mrf.mxu0
        %v525 = vadd.f32 0.0, %v524
        %v526 = vpop.f32.mrf.mxu0
        %v527 = vadd.f32 0.0, %v526
        %528 = vmatmul.bf16.gmra.mxu0 %v428
        %v529 = vpop.f32.mrf.mxu0
        %v530 = vadd.f32 0.0, %v529
        %v531 = vpop.f32.mrf.mxu0
        %v532 = vadd.f32 0.0, %v531
        %533 = vmatmul.bf16.gmra.mxu0 %v429
        %v534 = vpop.f32.mrf.mxu0
        %v535 = vadd.f32 0.0, %v534
        %v536 = vpop.f32.mrf.mxu0
        %v537 = vadd.f32 0.0, %v536
        %538 = vmatmul.bf16.gmra.mxu0 %v430
        %v539 = vpop.f32.mrf.mxu0
        %v540 = vadd.f32 0.0, %v539
        %v541 = vpop.f32.mrf.mxu0
        %v542 = vadd.f32 0.0, %v541
        %543 = vmatmul.bf16.gmra.mxu0 %v431
        %v544 = vpop.f32.mrf.mxu0
        %v545 = vadd.f32 0.0, %v544
        %v546 = vpop.f32.mrf.mxu0
        %v547 = vadd.f32 0.0, %v546
        %548 = vmatmul.bf16.gmra.mxu0 %v432
        %v549 = vpop.f32.mrf.mxu0
        %v550 = vadd.f32 0.0, %v549
        %v551 = vpop.f32.mrf.mxu0
        %v552 = vadd.f32 0.0, %v551
        %553 = vmatmul.bf16.gmra.mxu0 %v433
        %v554 = vpop.f32.mrf.mxu0
        %v555 = vadd.f32 0.0, %v554
        %v556 = vpop.f32.mrf.mxu0
        %v557 = vadd.f32 0.0, %v556
        %558 = vmatmul.bf16.gmra.mxu0 %v434
        %v559 = vpop.f32.mrf.mxu0
        %v560 = vadd.f32 0.0, %v559
        %v561 = vpop.f32.mrf.mxu0
        %v562 = vadd.f32 0.0, %v561
        %563 = vmatmul.bf16.gmra.mxu0 %v435
        %v564 = vpop.f32.mrf.mxu0
        %v565 = vadd.f32 0.0, %v564
        %v566 = vpop.f32.mrf.mxu0
        %v567 = vadd.f32 0.0, %v566
        %568 = vmatmul.bf16.gmra.mxu0 %v436
        %v569 = vpop.f32.mrf.mxu0
        %v570 = vadd.f32 0.0, %v569
        %v571 = vpop.f32.mrf.mxu0
        %v572 = vadd.f32 0.0, %v571
        %573 = vmatmul.bf16.gmra.mxu0 %v437
        %v574 = vpop.f32.mrf.mxu0
        %v575 = vadd.f32 0.0, %v574
        %v576 = vpop.f32.mrf.mxu0
        %v577 = vadd.f32 0.0, %v576
        %578 = vmatmul.bf16.gmra.mxu0 %v438
        %v579 = vpop.f32.mrf.mxu0
        %v580 = vadd.f32 0.0, %v579
        %v581 = vpop.f32.mrf.mxu0
        %v582 = vadd.f32 0.0, %v581
        %583 = vmatmul.bf16.gmra.mxu0 %v439
        %v584 = vpop.f32.mrf.mxu0
        %v585 = vadd.f32 0.0, %v584
        %v586 = vpop.f32.mrf.mxu0
        %v587 = vadd.f32 0.0, %v586
        %588 = vmatmul.bf16.gmra.mxu0 %v440
        %v589 = vpop.f32.mrf.mxu0
        %v590 = vadd.f32 0.0, %v589
        %v591 = vpop.f32.mrf.mxu0
        %v592 = vadd.f32 0.0, %v591
        %593 = vdwg.mxu0
        %v594 = vadd.f32 %v281, %v515
        %v595 = vadd.f32 %v282, %v517
        %v596 = vadd.f32 %v283, %v520
        %v597 = vadd.f32 %v284, %v522
        %v598 = vadd.f32 %v285, %v525
        %v599 = vadd.f32 %v286, %v527
        %v600 = vadd.f32 %v287, %v530
        %v601 = vadd.f32 %v288, %v532
        %v602 = vadd.f32 %v289, %v535
        %v603 = vadd.f32 %v290, %v537
        %v604 = vadd.f32 %v291, %v540
        %v605 = vadd.f32 %v292, %v542
        %v606 = vadd.f32 %v293, %v545
        %v607 = vadd.f32 %v294, %v547
        %v608 = vadd.f32 %v295, %v550
        %v609 = vadd.f32 %v296, %v552
        %v610 = vadd.f32 %v297, %v555
        %v611 = vadd.f32 %v298, %v557
        %v612 = vadd.f32 %v299, %v560
        %v613 = vadd.f32 %v300, %v562
        %v614 = vadd.f32 %v301, %v565
        %v615 = vadd.f32 %v302, %v567
        %v616 = vadd.f32 %v303, %v570
        %v617 = vadd.f32 %v304, %v572
        %v618 = vadd.f32 %v305, %v575
        %v619 = vadd.f32 %v306, %v577
        %v620 = vadd.f32 %v307, %v580
        %v621 = vadd.f32 %v308, %v582
        %v622 = vadd.f32 %v309, %v585
        %v623 = vadd.f32 %v310, %v587
        %v624 = vadd.f32 %v311, %v590
        %v625 = vadd.f32 %v312, %v592
        %626 = vst [vmem:[#allocation2] sm:$0xff] %v594
        %627 = vst [vmem:[#allocation2 + $0x8] sm:$0xff] %v595
        %628 = vst [vmem:[#allocation2 + $0x10] sm:$0xff] %v596
        %629 = vst [vmem:[#allocation2 + $0x18] sm:$0xff] %v597
        %630 = vst [vmem:[#allocation2 + $0x20] sm:$0xff] %v598
        %631 = vst [vmem:[#allocation2 + $0x28] sm:$0xff] %v599
        %632 = vst [vmem:[#allocation2 + $0x30] sm:$0xff] %v600
        %633 = vst [vmem:[#allocation2 + $0x38] sm:$0xff] %v601
        %634 = vst [vmem:[#allocation2 + $0x40] sm:$0xff] %v602
        %635 = vst [vmem:[#allocation2 + $0x48] sm:$0xff] %v603
        %636 = vst [vmem:[#allocation2 + $0x50] sm:$0xff] %v604
        %637 = vst [vmem:[#allocation2 + $0x58] sm:$0xff] %v605
        %638 = vst [vmem:[#allocation2 + $0x60] sm:$0xff] %v606
        %639 = vst [vmem:[#allocation2 + $0x68] sm:$0xff] %v607
        %640 = vst [vmem:[#allocation2 + $0x70] sm:$0xff] %v608
        %641 = vst [vmem:[#allocation2 + $0x78] sm:$0xff] %v609
        %642 = vst [vmem:[#allocation2 + $0x80] sm:$0xff] %v610
        %643 = vst [vmem:[#allocation2 + $0x88] sm:$0xff] %v611
        %644 = vst [vmem:[#allocation2 + $0x90] sm:$0xff] %v612
        %645 = vst [vmem:[#allocation2 + $0x98] sm:$0xff] %v613
        %646 = vst [vmem:[#allocation2 + $0xa0] sm:$0xff] %v614
        %647 = vst [vmem:[#allocation2 + $0xa8] sm:$0xff] %v615
        %648 = vst [vmem:[#allocation2 + $0xb0] sm:$0xff] %v616
        %649 = vst [vmem:[#allocation2 + $0xb8] sm:$0xff] %v617
        %650 = vst [vmem:[#allocation2 + $0xc0] sm:$0xff] %v618
        %651 = vst [vmem:[#allocation2 + $0xc8] sm:$0xff] %v619
        %652 = vst [vmem:[#allocation2 + $0xd0] sm:$0xff] %v620
        %653 = vst [vmem:[#allocation2 + $0xd8] sm:$0xff] %v621
        %654 = vst [vmem:[#allocation2 + $0xe0] sm:$0xff] %v622
        %655 = vst [vmem:[#allocation2 + $0xe8] sm:$0xff] %v623
        %656 = vst [vmem:[#allocation2 + $0xf0] sm:$0xff] %v624
        %657 = vst [vmem:[#allocation2 + $0xf8] sm:$0xff] %v625
        // Predicated region
        $region41: #{tpu_custom_call.1} parent=27 // pred_check
          %p658 = pneg %p245
        $region42: #{tpu_custom_call.1} parent=27 // pred_check_branch
          %660 = sbr.rel (%p658) target = $region44
        $region43: #{tpu_custom_call.1} parent=27 // pred_region
          %v661 = vld [vmem:[#allocation2] sm:$0xff]
          %v662 = vld [vmem:[#allocation2 + $0x8] sm:$0xff]
          %v663 = vld [vmem:[#allocation2 + $0x10] sm:$0xff]
          %v664 = vld [vmem:[#allocation2 + $0x18] sm:$0xff]
          %v665 = vld [vmem:[#allocation2 + $0x20] sm:$0xff]
          %v666 = vld [vmem:[#allocation2 + $0x28] sm:$0xff]
          %v667 = vld [vmem:[#allocation2 + $0x30] sm:$0xff]
          %v668 = vld [vmem:[#allocation2 + $0x38] sm:$0xff]
          %v669 = vld [vmem:[#allocation2 + $0x40] sm:$0xff]
          %v670 = vld [vmem:[#allocation2 + $0x48] sm:$0xff]
          %v671 = vld [vmem:[#allocation2 + $0x50] sm:$0xff]
          %v672 = vld [vmem:[#allocation2 + $0x58] sm:$0xff]
          %v673 = vld [vmem:[#allocation2 + $0x60] sm:$0xff]
          %v674 = vld [vmem:[#allocation2 + $0x68] sm:$0xff]
          %v675 = vld [vmem:[#allocation2 + $0x70] sm:$0xff]
          %v676 = vld [vmem:[#allocation2 + $0x78] sm:$0xff]
          %v677 = vld [vmem:[#allocation2 + $0x80] sm:$0xff]
          %v678 = vld [vmem:[#allocation2 + $0x88] sm:$0xff]
          %v679 = vld [vmem:[#allocation2 + $0x90] sm:$0xff]
          %v680 = vld [vmem:[#allocation2 + $0x98] sm:$0xff]
          %v681 = vld [vmem:[#allocation2 + $0xa0] sm:$0xff]
          %v682 = vld [vmem:[#allocation2 + $0xa8] sm:$0xff]
          %v683 = vld [vmem:[#allocation2 + $0xb0] sm:$0xff]
          %v684 = vld [vmem:[#allocation2 + $0xb8] sm:$0xff]
          %v685 = vld [vmem:[#allocation2 + $0xc0] sm:$0xff]
          %v686 = vld [vmem:[#allocation2 + $0xc8] sm:$0xff]
          %v687 = vld [vmem:[#allocation2 + $0xd0] sm:$0xff]
          %v688 = vld [vmem:[#allocation2 + $0xd8] sm:$0xff]
          %v689 = vld [vmem:[#allocation2 + $0xe0] sm:$0xff]
          %v690 = vld [vmem:[#allocation2 + $0xe8] sm:$0xff]
          %v691 = vld [vmem:[#allocation2 + $0xf0] sm:$0xff]
          %v692 = vld [vmem:[#allocation2 + $0xf8] sm:$0xff]
          %v693 = vpack.c.bf16 %v661, %v661
          %v694 = vpack.c.bf16 %v662, %v662
          %v695 = vpack.c.bf16 %v663, %v663
          %v696 = vpack.c.bf16 %v664, %v664
          %v697 = vpack.c.bf16 %v665, %v665
          %v698 = vpack.c.bf16 %v666, %v666
          %v699 = vpack.c.bf16 %v667, %v667
          %v700 = vpack.c.bf16 %v668, %v668
          %v701 = vpack.c.bf16 %v669, %v669
          %v702 = vpack.c.bf16 %v670, %v670
          %v703 = vpack.c.bf16 %v671, %v671
          %v704 = vpack.c.bf16 %v672, %v672
          %v705 = vpack.c.bf16 %v673, %v673
          %v706 = vpack.c.bf16 %v674, %v674
          %v707 = vpack.c.bf16 %v675, %v675
          %v708 = vpack.c.bf16 %v676, %v676
          %v709 = vpack.c.bf16 %v677, %v677
          %v710 = vpack.c.bf16 %v678, %v678
          %v711 = vpack.c.bf16 %v679, %v679
          %v712 = vpack.c.bf16 %v680, %v680
          %v713 = vpack.c.bf16 %v681, %v681
          %v714 = vpack.c.bf16 %v682, %v682
          %v715 = vpack.c.bf16 %v683, %v683
          %v716 = vpack.c.bf16 %v684, %v684
          %v717 = vpack.c.bf16 %v685, %v685
          %v718 = vpack.c.bf16 %v686, %v686
          %v719 = vpack.c.bf16 %v687, %v687
          %v720 = vpack.c.bf16 %v688, %v688
          %v721 = vpack.c.bf16 %v689, %v689
          %v722 = vpack.c.bf16 %v690, %v690
          %v723 = vpack.c.bf16 %v691, %v691
          %v724 = vpack.c.bf16 %v692, %v692
          %725 = vst [vmem:[%s234] sm:$0xf] %v693
          %726 = vst [vmem:[%s234 + $0x4] sm:$0xf] %v694
          %727 = vst [vmem:[%s234 + $0x8] sm:$0xf] %v695
          %728 = vst [vmem:[%s234 + $0xc] sm:$0xf] %v696
          %729 = vst [vmem:[%s234 + $0x10] sm:$0xf] %v697
          %730 = vst [vmem:[%s234 + $0x14] sm:$0xf] %v698
          %731 = vst [vmem:[%s234 + $0x18] sm:$0xf] %v699
          %732 = vst [vmem:[%s234 + $0x1c] sm:$0xf] %v700
          %733 = vst [vmem:[%s234 + $0x20] sm:$0xf] %v701
          %734 = vst [vmem:[%s234 + $0x24] sm:$0xf] %v702
          %735 = vst [vmem:[%s234 + $0x28] sm:$0xf] %v703
          %736 = vst [vmem:[%s234 + $0x2c] sm:$0xf] %v704
          %737 = vst [vmem:[%s234 + $0x30] sm:$0xf] %v705
          %738 = vst [vmem:[%s234 + $0x34] sm:$0xf] %v706
          %739 = vst [vmem:[%s234 + $0x38] sm:$0xf] %v707
          %740 = vst [vmem:[%s234 + $0x3c] sm:$0xf] %v708
          %741 = vst [vmem:[%s234 + $0x40] sm:$0xf] %v709
          %742 = vst [vmem:[%s234 + $0x44] sm:$0xf] %v710
          %743 = vst [vmem:[%s234 + $0x48] sm:$0xf] %v711
          %744 = vst [vmem:[%s234 + $0x4c] sm:$0xf] %v712
          %745 = vst [vmem:[%s234 + $0x50] sm:$0xf] %v713
          %746 = vst [vmem:[%s234 + $0x54] sm:$0xf] %v714
          %747 = vst [vmem:[%s234 + $0x58] sm:$0xf] %v715
          %748 = vst [vmem:[%s234 + $0x5c] sm:$0xf] %v716
          %749 = vst [vmem:[%s234 + $0x60] sm:$0xf] %v717
          %750 = vst [vmem:[%s234 + $0x64] sm:$0xf] %v718
          %751 = vst [vmem:[%s234 + $0x68] sm:$0xf] %v719
          %752 = vst [vmem:[%s234 + $0x6c] sm:$0xf] %v720
          %753 = vst [vmem:[%s234 + $0x70] sm:$0xf] %v721
          %754 = vst [vmem:[%s234 + $0x74] sm:$0xf] %v722
          %755 = vst [vmem:[%s234 + $0x78] sm:$0xf] %v723
          %756 = vst [vmem:[%s234 + $0x7c] sm:$0xf] %v724
          %v757 = vadd.f32 %v661, %v662
          %v758 = vadd.f32 %v757, %v663
          %v759 = vadd.f32 %v758, %v664
          %v760 = vadd.f32 %v759, %v665
          %v761 = vadd.f32 %v760, %v666
          %v762 = vadd.f32 %v761, %v667
          %v763 = vadd.f32 %v762, %v668
          %v764 = vadd.f32 %v763, %v669
          %v765 = vadd.f32 %v764, %v670
          %v766 = vadd.f32 %v765, %v671
          %v767 = vadd.f32 %v766, %v672
          %v768 = vadd.f32 %v767, %v673
          %v769 = vadd.f32 %v768, %v674
          %v770 = vadd.f32 %v769, %v675
          %v771 = vadd.f32 %v770, %v676
          %v772 = vadd.f32 %v771, %v677
          %v773 = vadd.f32 %v772, %v678
          %v774 = vadd.f32 %v773, %v679
          %v775 = vadd.f32 %v774, %v680
          %v776 = vadd.f32 %v775, %v681
          %v777 = vadd.f32 %v776, %v682
          %v778 = vadd.f32 %v777, %v683
          %v779 = vadd.f32 %v778, %v684
          %v780 = vadd.f32 %v779, %v685
          %v781 = vadd.f32 %v780, %v686
          %v782 = vadd.f32 %v781, %v687
          %v783 = vadd.f32 %v782, %v688
          %v784 = vadd.f32 %v783, %v689
          %v785 = vadd.f32 %v784, %v690
          %v786 = vadd.f32 %v785, %v691
          %v787 = vadd.f32 %v786, %v692
          %v788 = vrot.slane %v787, 4
          %v789 = vadd.f32 %v787, %v788
          %v790 = vrot.slane %v789, 2
          %v791 = vadd.f32 %v789, %v790
          %v792 = vrot.slane %v791, 1
          %v793 = vadd.f32 %v791, %v792
          %v794 = vmul.f32 %v661, %v661
          %v795 = vmul.f32 %v662, %v662
          %v796 = vmul.f32 %v663, %v663
          %v797 = vmul.f32 %v664, %v664
          %v798 = vmul.f32 %v665, %v665
          %v799 = vmul.f32 %v666, %v666
          %v800 = vmul.f32 %v667, %v667
          %v801 = vmul.f32 %v668, %v668
          %v802 = vmul.f32 %v669, %v669
          %v803 = vmul.f32 %v670, %v670
          %v804 = vmul.f32 %v671, %v671
          %v805 = vmul.f32 %v672, %v672
          %v806 = vmul.f32 %v673, %v673
          %v807 = vmul.f32 %v674, %v674
          %v808 = vmul.f32 %v675, %v675
          %v809 = vmul.f32 %v676, %v676
          %v810 = vmul.f32 %v677, %v677
          %v811 = vmul.f32 %v678, %v678
          %v812 = vmul.f32 %v679, %v679
          %v813 = vmul.f32 %v680, %v680
          %v814 = vmul.f32 %v681, %v681
          %v815 = vmul.f32 %v682, %v682
          %v816 = vmul.f32 %v683, %v683
          %v817 = vmul.f32 %v684, %v684
          %v818 = vmul.f32 %v685, %v685
          %v819 = vmul.f32 %v686, %v686
          %v820 = vmul.f32 %v687, %v687
          %v821 = vmul.f32 %v688, %v688
          %v822 = vmul.f32 %v689, %v689
          %v823 = vmul.f32 %v690, %v690
          %v824 = vmul.f32 %v691, %v691
          %v825 = vmul.f32 %v692, %v692
          %v826 = vadd.f32 %v794, %v795
          %v827 = vadd.f32 %v826, %v796
          %v828 = vadd.f32 %v827, %v797
          %v829 = vadd.f32 %v828, %v798
          %v830 = vadd.f32 %v829, %v799
          %v831 = vadd.f32 %v830, %v800
          %v832 = vadd.f32 %v831, %v801
          %v833 = vadd.f32 %v832, %v802
          %v834 = vadd.f32 %v833, %v803
          %v835 = vadd.f32 %v834, %v804
          %v836 = vadd.f32 %v835, %v805
          %v837 = vadd.f32 %v836, %v806
          %v838 = vadd.f32 %v837, %v807
          %v839 = vadd.f32 %v838, %v808
          %v840 = vadd.f32 %v839, %v809
          %v841 = vadd.f32 %v840, %v810
          %v842 = vadd.f32 %v841, %v811
          %v843 = vadd.f32 %v842, %v812
          %v844 = vadd.f32 %v843, %v813
          %v845 = vadd.f32 %v844, %v814
          %v846 = vadd.f32 %v845, %v815
          %v847 = vadd.f32 %v846, %v816
          %v848 = vadd.f32 %v847, %v817
          %v849 = vadd.f32 %v848, %v818
          %v850 = vadd.f32 %v849, %v819
          %v851 = vadd.f32 %v850, %v820
          %v852 = vadd.f32 %v851, %v821
          %v853 = vadd.f32 %v852, %v822
          %v854 = vadd.f32 %v853, %v823
          %v855 = vadd.f32 %v854, %v824
          %v856 = vadd.f32 %v855, %v825
          %v857 = vrot.slane %v856, 4
          %v858 = vadd.f32 %v856, %v857
          %v859 = vrot.slane %v858, 2
          %v860 = vadd.f32 %v858, %v859
          %v861 = vrot.slane %v860, 1
          %v862 = vadd.f32 %v860, %v861
          %v863 = vlaneseq
          %v864 = vshrl.u32 %v863, 7
          %vm865 = vcmp.eq.s32.totalorder %v864, 0
          %vm866 = vcmp.eq.s32.totalorder %v864, 1
          %v867 = vsel %vm866, %v862, 0.0
          %v868 = vsel %vm865, %v793, %v867
          %869 = vst [vmem:[%s241] sm:$0xff] %v868
        $region44: #{tpu_custom_call.1} parent=27 // pred_fallthru
          _
        %s870 = sand.u32 %s99, 1
        %s871 = scalar_lea.sflag [#allocation5], %s870
        %s872 = sand.u32 %s99, 1
        %s873 = smul.addr %s872, 128
        %s874 = scalar_lea.vmem [#allocation8], %s873
        %s875 = sand.u32 %s125, 1
        %s876 = scalar_lea.sflag [#allocation10], %s875
        %s877 = sand.u32 %s125, 1
        %s878 = smul.addr %s877, 8
        %s879 = scalar_lea.vmem [#allocation9], %s878
        // Predicated region
        $region45: #{tpu_custom_call.1} parent=27 // pred_check
          %p880 = pneg %p109
        $region46: #{tpu_custom_call.1} parent=27 // pred_check_branch
          %882 = sbr.rel (%p880) target = $region48
        $region47: #{tpu_custom_call.1} parent=27 // pred_region
          %s883 = smul.u32 32, %s29
          %885 = vsyncadd %s871, 0
          %s886 = smul.addr %s883, 4
          %s887 = scalar_lea.hbm %s2, %s886
          %s888 = sshll.u32 %s874, 4
          %s889 = int_to_ptr.vmem [resolvable:$true] %s888
          %s890 = sshll.u32 %s887, 4
          %s891 = int_to_ptr.hbm [resolvable:$true] %s890
          %896 = dma.vmem_to_hbm [thread:$0]  %s889, 2048, %s891, %s871, 64, 64, 4
        $region48: #{tpu_custom_call.1} parent=27 // pred_fallthru
          _
        // Predicated region
        $region49: #{tpu_custom_call.1} parent=27 // pred_check
          %p897 = pneg %p135
        $region50: #{tpu_custom_call.1} parent=27 // pred_check_branch
          %899 = sbr.rel (%p897) target = $region52
        $region51: #{tpu_custom_call.1} parent=27 // pred_region
          %901 = vsyncadd %s876, 0
          %s902 = smul.addr %s29, 8
          %s903 = scalar_lea.hbm %s3, %s902
          %s905 = sshll.u32 %s879, 4
          %s906 = int_to_ptr.vmem [resolvable:$true] %s905
          %s907 = sshll.u32 %s903, 4
          %s908 = int_to_ptr.hbm [resolvable:$true] %s907
          %910 = dma.vmem_to_hbm [thread:$0]  %s906, 128, %s908, %s876
        $region52: #{tpu_custom_call.1} parent=27 // pred_fallthru
          _
      $region28: #{tpu_custom_call.1} parent=5 // pred_fallthru
        _
      %p911 = scmp.le.s32.totalorder 2, %s20
      // Predicated region
      $region53: #{tpu_custom_call.1} parent=5 // pred_check
        %p912 = pneg %p911
      $region54: #{tpu_custom_call.1} parent=5 // pred_check_branch
        %914 = sbr.rel (%p912) target = $region56
      $region55: #{tpu_custom_call.1} parent=5 // pred_region
        %s915 = ssub.s32 %s20, 2
        // Predicated region
        $region57: #{tpu_custom_call.1} parent=55 // pred_check
          %p916 = pneg %p115
        $region58: #{tpu_custom_call.1} parent=55 // pred_check_branch
          %918 = sbr.rel (%p916) target = $region60
        $region59: #{tpu_custom_call.1} parent=55 // pred_region
          %s919 = sand.u32 %s100, 1
          %s920 = scalar_lea.sflag [#allocation5], %s919
          %s921 = sand.u32 %s100, 1
          %s922 = smul.addr %s921, 128
          %s923 = scalar_lea.vmem [#allocation8], %s922
          %925 = dma.done %s920, 2048
        $region60: #{tpu_custom_call.1} parent=55 // pred_fallthru
          _
        // Predicated region
        $region61: #{tpu_custom_call.1} parent=55 // pred_check
          %p926 = pneg %p141
        $region62: #{tpu_custom_call.1} parent=55 // pred_check_branch
          %928 = sbr.rel (%p926) target = $region64
        $region63: #{tpu_custom_call.1} parent=55 // pred_region
          %s929 = sand.u32 %s126, 1
          %s930 = scalar_lea.sflag [#allocation10], %s929
          %s931 = sand.u32 %s126, 1
          %s932 = smul.addr %s931, 8
          %s933 = scalar_lea.vmem [#allocation9], %s932
          %935 = dma.done %s930, 128
        $region64: #{tpu_custom_call.1} parent=55 // pred_fallthru
          _
      $region56: #{tpu_custom_call.1} parent=5 // pred_fallthru
        _
    $region6: #{tpu_custom_call.1} parent=1 // loop_footer
      %s24 = sadd.s32 1, %s20
    $region7: #{tpu_custom_call.1} parent=1 // loop_footer_branch
      %19 = sbr.rel target = $region3
    $region8: #{tpu_custom_call.1} parent=1 // loop_exit
      _
    %936 = vsyncpa [#allocation4], 1
    %s937 = scalar_lea.sflag [#allocation4], 1
    %938 = vsyncpa %s937, 1
    %939 = vsyncpa [#allocation7], 1
    %940 = vsyncpa [#allocation5], 1
    %s941 = scalar_lea.sflag [#allocation5], 1
    %942 = vsyncpa %s941, 1
    %943 = vsyncpa [#allocation10], 1
    %s944 = scalar_lea.sflag [#allocation10], 1
    %945 = vsyncpa %s944, 1

</llo_original>
